<compile_context>
chip_gen: v7x
topology: tpu7x:2x2x1
jax: 0.10.0
libtpu: 0.0.40
codegen_flags: <defaults>
</compile_context>

<pallas_src>
import math

import jax
import jax.numpy as jnp
from jax.experimental import pallas as pl
from jax.experimental.pallas import tpu as pltpu

INPUT_DIM = 20                     # fc1: 20->20, fc2: 20->10, fc3: 10->10
HIDDEN = INPUT_DIM // 2            # 10
NUM_CLASSES = 10

GROUPS = 12                        # samples packed per kernel row
GK_IN = GROUPS * INPUT_DIM         # 240  (packed input / hidden1 width)
GK_OUT = GROUPS * NUM_CLASSES      # 120  (packed hidden2 / logits width)
NEG = -1e30                        # "minus infinity" for the masked max tree


def _round_up(n, m):
    return ((n + m - 1) // m) * m


# --- packed-parameter layout (row offsets aligned to 8 sublanes) -------------
W1_ROW = 0                                   # (240, 240) block-diag fc1
B1_ROW = W1_ROW + GK_IN                      # 240   (1, 240) tiled bias1
W2_ROW = _round_up(B1_ROW + 1, 8)            # 248   (240, 120) block-diag fc2
B2_ROW = W2_ROW + GK_IN                      # 488   (1, 120) tiled bias2
W3_ROW = _round_up(B2_ROW + 1, 8)            # 496   (120, 120) block-diag fc3
B3_ROW = W3_ROW + GK_OUT                     # 616   (1, 120) tiled bias3
S_ROW = _round_up(B3_ROW + 1, 8)             # 624   (120, 120) group indicator
POS_ROW = _round_up(S_ROW + GK_OUT, 8)       # 744   (1, 120) in-group position
PARAM_ROWS = _round_up(POS_ROW + 1, 8)       # 752
PARAM_COLS = GK_IN                           # 240


def _mlp_logsoftmax_kernel(x_ref, p_ref, out_ref):
    # x block: (block_rows, 240) = 12 samples per row, features on lanes.
    x = x_ref[...].astype(jnp.float32)

    # Slice the parameter Ref directly (never load the whole packed block).
    w1 = p_ref[W1_ROW:W1_ROW + GK_IN, :]               # (240, 240)
    b1 = p_ref[B1_ROW:B1_ROW + 1, :]                   # (1, 240)
    w2 = p_ref[W2_ROW:W2_ROW + GK_IN, 0:GK_OUT]        # (240, 120)
    b2 = p_ref[B2_ROW:B2_ROW + 1, 0:GK_OUT]            # (1, 120)
    w3 = p_ref[W3_ROW:W3_ROW + GK_OUT, 0:GK_OUT]       # (120, 120)
    b3 = p_ref[B3_ROW:B3_ROW + 1, 0:GK_OUT]            # (1, 120)
    sg = p_ref[S_ROW:S_ROW + GK_OUT, 0:GK_OUT]         # (120, 120) indicator
    pos_row = p_ref[POS_ROW:POS_ROW + 1, 0:GK_OUT]     # (1, 120) 0..9 tiled

    # Block-diagonal MLP: 12 independent samples per row.
    h1 = jnp.maximum(
        jnp.dot(x, w1, preferred_element_type=jnp.float32) + b1, 0.0)
    h2 = jnp.maximum(
        jnp.dot(h1, w2, preferred_element_type=jnp.float32) + b2, 0.0)
    logits = jnp.dot(h2, w3, preferred_element_type=jnp.float32) + b3  # (r,120)

    # --- grouped log_softmax over each contiguous group of 10 lanes ----------
    pos = jnp.broadcast_to(pos_row, logits.shape)       # in-group class index

    # Per-group suffix-max tree: after shifts 1,2,4,8 the first lane of each
    # group (pos == 0) holds the full group max.  Shifts never cross a group
    # boundary thanks to the pos-based masks (wrapped lanes are masked too).
    m = logits
    for s in (1, 2, 4, 8):
        rot = jnp.concatenate([m[:, s:], m[:, :s]], axis=1)
        m = jnp.maximum(m, jnp.where(pos < float(NUM_CLASSES - s), rot, NEG))

    # Broadcast the group max (exactly one nonzero leader per group) and the
    # grouped exp-sum with the same (120,120) indicator matmul on the MXU.
    leader = jnp.where(pos == 0.0, m, 0.0)
    gmax = jnp.dot(leader, sg, preferred_element_type=jnp.float32)
    z = logits - gmax
    gsum = jnp.dot(jnp.exp(z), sg, preferred_element_type=jnp.float32)
    out_ref[...] = (z - jnp.log(gsum)).astype(out_ref.dtype)


def pack_params(params):
    """Pack (w1,b1,w2,b2,w3,b3) block-diagonally into one (752, 240) buffer."""
    w1, b1, w2, b2, w3, b3 = params
    eye = jnp.eye(GROUPS, dtype=jnp.float32)
    w1b = jnp.kron(eye, w1.astype(jnp.float32))          # (240, 240)
    w2b = jnp.kron(eye, w2.astype(jnp.float32))          # (240, 120)
    w3b = jnp.kron(eye, w3.astype(jnp.float32))          # (120, 120)
    b1t = jnp.tile(jnp.reshape(b1, (-1,)).astype(jnp.float32), GROUPS)  # (240,)
    b2t = jnp.tile(jnp.reshape(b2, (-1,)).astype(jnp.float32), GROUPS)  # (120,)
    b3t = jnp.tile(jnp.reshape(b3, (-1,)).astype(jnp.float32), GROUPS)  # (120,)

    grp = jnp.arange(GK_OUT) // NUM_CLASSES
    indicator = (grp[:, None] == grp[None, :]).astype(jnp.float32)      # (120,120)
    pos = jnp.tile(jnp.arange(NUM_CLASSES, dtype=jnp.float32), GROUPS)  # (120,)

    buf = jnp.zeros((PARAM_ROWS, PARAM_COLS), jnp.float32)
    buf = buf.at[W1_ROW:W1_ROW + GK_IN, 0:GK_IN].set(w1b)
    buf = buf.at[B1_ROW, 0:GK_IN].set(b1t)
    buf = buf.at[W2_ROW:W2_ROW + GK_IN, 0:GK_OUT].set(w2b)
    buf = buf.at[B2_ROW, 0:GK_OUT].set(b2t)
    buf = buf.at[W3_ROW:W3_ROW + GK_OUT, 0:GK_OUT].set(w3b)
    buf = buf.at[B3_ROW, 0:GK_OUT].set(b3t)
    buf = buf.at[S_ROW:S_ROW + GK_OUT, 0:GK_OUT].set(indicator)
    buf = buf.at[POS_ROW, 0:GK_OUT].set(pos)
    return buf


def _run_packed(xp, packed_params, block_rows, out_dtype):
    """xp: (rows, 240) packed input with rows % block_rows == 0."""
    rows = xp.shape[0]
    assert rows % block_rows == 0 and rows >= block_rows
    grid = (rows // block_rows,)
    return pl.pallas_call(
        _mlp_logsoftmax_kernel,
        out_shape=jax.ShapeDtypeStruct((rows, GK_OUT), out_dtype),
        grid=grid,
        in_specs=[
            # Batch tile of packed x: auto double-buffered over the grid.
            pl.BlockSpec((block_rows, GK_IN), lambda i: (i, 0)),
            # Packed params: constant block index -> single VMEM-resident copy.
            pl.BlockSpec((PARAM_ROWS, PARAM_COLS), lambda i: (0, 0)),
        ],
        out_specs=pl.BlockSpec((block_rows, GK_OUT), lambda i: (i, 0)),
        compiler_params=pltpu.CompilerParams(
            dimension_semantics=("parallel",),
            vmem_limit_bytes=48 * 1024 * 1024,
        ),
    )(xp, packed_params)


def top_model_forward(x, packed_params, *, block_rows=2048,
                      out_dtype=jnp.float32):
    """x: (B, 20) float -> (B, 10) log-probabilities.

    block_rows = packed rows (12 samples each) per grid step; default 2048
    (~24.6k samples, ~12-16 MiB VMEM incl. pipelining).  Raise to 4096-8192 on
    v6e; keep <= 2048 on v7x unless vmem_limit_bytes is re-derived.
    """
    B, d = x.shape
    assert d == INPUT_DIM
    block_rows = max(8, (block_rows // 8) * 8)
    samples_per_block = block_rows * GROUPS

    outs = []
    b_main = (B // samples_per_block) * samples_per_block
    if b_main:
        # Free views: slice of the aligned prefix + row-merging reshape.
        xp = x[:b_main].reshape(b_main // GROUPS, GK_IN)
        om = _run_packed(xp, packed_params, block_rows, out_dtype)
        outs.append(om.reshape(b_main, NUM_CLASSES))

    b_tail = B - b_main
    if b_tail:
        # Pad ONLY the tail slice (never the whole array) up to 96 samples.
        tail = x[b_main:]
        pad_to = _round_up(b_tail, GROUPS * 8)
        if pad_to != b_tail:
            tail = jnp.pad(tail, ((0, pad_to - b_tail), (0, 0)))
        tp = tail.reshape(pad_to // GROUPS, GK_IN)
        ot = _run_packed(tp, packed_params, tp.shape[0], out_dtype)
        outs.append(ot.reshape(pad_to, NUM_CLASSES)[:b_tail])

    return outs[0] if len(outs) == 1 else jnp.concatenate(outs, axis=0)


def init_params(key):
    """Deterministic init matching the module (kaiming weights, uniform bias).

    Weights are stored transposed: (in_features, out_features), so the kernel
    computes x @ W + b (== PyTorch's x @ W.T + b).
    """
    dims = [(INPUT_DIM, INPUT_DIM),      # fc1top
            (INPUT_DIM, HIDDEN),         # fc2top
            (HIDDEN, NUM_CLASSES)]       # fc3top
    params = []
    for (fan_in, fan_out) in dims:
        key, kw, kb = jax.random.split(key, 3)
        std = math.sqrt(2.0 / fan_in)
        w = jax.random.normal(kw, (fan_in, fan_out), jnp.float32) * std
        bound = 1.0 / math.sqrt(fan_in)
        b = jax.random.uniform(kb, (1, fan_out), jnp.float32,
                               minval=-bound, maxval=bound)
        params += [w, b]
    return tuple(params)


def reference_forward(x, params):
    """Pure-JAX reference of the same forward pass (for the sanity check)."""
    w1, b1, w2, b2, w3, b3 = params
    h1 = jnp.maximum(x @ w1 + b1, 0.0)
    h2 = jnp.maximum(h1 @ w2 + b2, 0.0)
    logits = h2 @ w3 + b3
    return jax.nn.log_softmax(logits, axis=1)


if __name__ == "__main__":
    key = jax.random.PRNGKey(0)
    key, kx1, kx2 = jax.random.split(key, 3)

    params = init_params(key)
    packed = pack_params(params)

    # Small block_rows for the demo (8 packed rows = 96 samples per grid step).
    fwd = jax.jit(lambda xx: top_model_forward(xx, packed, block_rows=8))

    # Aligned batch: two full 96-sample blocks -> main path only, grid=(2,).
    batch = 192
    x = jax.random.normal(kx1, (batch, INPUT_DIM), jnp.float32)
    out = jax.block_until_ready(fwd(x))
    ref = reference_forward(x, params)
    assert out.shape == (batch, NUM_CLASSES)
    assert jnp.allclose(out, ref, atol=1e-4, rtol=1e-4)
    assert jnp.allclose(jnp.sum(jnp.exp(out), axis=1), 1.0, atol=1e-4)

    # Ragged batch: 192 aligned samples + an 8-sample tail (tail-only padding).
    batch2 = 200
    x2 = jax.random.normal(kx2, (batch2, INPUT_DIM), jnp.float32)
    out2 = jax.block_until_ready(fwd(x2))
    ref2 = reference_forward(x2, params)
    assert out2.shape == (batch2, NUM_CLASSES)
    assert jnp.allclose(out2, ref2, atol=1e-4, rtol=1e-4)
    assert jnp.allclose(jnp.sum(jnp.exp(out2), axis=1), 1.0, atol=1e-4)

    print("KERNEL_OK")
</pallas_src>

<mosaic_0001>
module attributes {stable_mosaic.version = 11 : i64} {
  func.func @_mlp_logsoftmax_kernel(%arg0: i32, %arg1: memref<8x240xf32, #tpu.memory_space<vmem>>, %arg2: memref<752x240xf32, #tpu.memory_space<vmem>>, %arg3: memref<8x120xf32, #tpu.memory_space<vmem>>) attributes {dimension_semantics = [#tpu.dimension_semantics<parallel>], iteration_bounds = array<i64: 2>, scalar_prefetch = 0 : i64, scratch_operands = 0 : i64, tpu.core_type = #tpu.core_type<tc>, window_params = [{transform_indices = @transform_0, window_bounds = array<i64: 8, 240>}, {pipeline_mode = #tpu.pipeline_mode<synchronous>, transform_indices = @transform_1, window_bounds = array<i64: 752, 240>}, {transform_indices = @transform_2, window_bounds = array<i64: 8, 120>}]} {
    %c0 = arith.constant 0 : index
    %c0_0 = arith.constant 0 : index
    %0 = vector.load %arg1[%c0, %c0_0] : memref<8x240xf32, #tpu.memory_space<vmem>>, vector<8x240xf32>
    %c0_1 = arith.constant 0 : index
    %c0_2 = arith.constant 0 : index
    %1 = vector.load %arg2[%c0_1, %c0_2] : memref<752x240xf32, #tpu.memory_space<vmem>>, vector<240x240xf32>
    %c240 = arith.constant 240 : index
    %c0_3 = arith.constant 0 : index
    %2 = vector.load %arg2[%c240, %c0_3] : memref<752x240xf32, #tpu.memory_space<vmem>>, vector<1x240xf32>
    %c248 = arith.constant 248 : index
    %c0_4 = arith.constant 0 : index
    %3 = vector.load %arg2[%c248, %c0_4] : memref<752x240xf32, #tpu.memory_space<vmem>>, vector<240x120xf32>
    %c488 = arith.constant 488 : index
    %c0_5 = arith.constant 0 : index
    %4 = vector.load %arg2[%c488, %c0_5] : memref<752x240xf32, #tpu.memory_space<vmem>>, vector<1x120xf32>
    %c496 = arith.constant 496 : index
    %c0_6 = arith.constant 0 : index
    %5 = vector.load %arg2[%c496, %c0_6] : memref<752x240xf32, #tpu.memory_space<vmem>>, vector<120x120xf32>
    %c616 = arith.constant 616 : index
    %c0_7 = arith.constant 0 : index
    %6 = vector.load %arg2[%c616, %c0_7] : memref<752x240xf32, #tpu.memory_space<vmem>>, vector<1x120xf32>
    %c624 = arith.constant 624 : index
    %c0_8 = arith.constant 0 : index
    %7 = vector.load %arg2[%c624, %c0_8] : memref<752x240xf32, #tpu.memory_space<vmem>>, vector<120x120xf32>
    %c744 = arith.constant 744 : index
    %c0_9 = arith.constant 0 : index
    %8 = vector.load %arg2[%c744, %c0_9] : memref<752x240xf32, #tpu.memory_space<vmem>>, vector<1x120xf32>
    %cst = arith.constant dense<0.000000e+00> : vector<8x240xf32>
    %9 = tpu.matmul %0, %1, %cst {dimension_numbers = #tpu.dot_dimension_numbers<[1], [0], [0], [1], [0, 0, 1, 1], [], []>} : vector<8x240xf32>, vector<240x240xf32>, vector<8x240xf32> -> vector<8x240xf32>
    %10 = vector.broadcast %2 : vector<1x240xf32> to vector<8x240xf32>
    %11 = arith.addf %9, %10 : vector<8x240xf32>
    %cst_10 = arith.constant 0.000000e+00 : f32
    %12 = vector.broadcast %cst_10 : f32 to vector<8x240xf32>
    %13 = arith.maximumf %11, %12 : vector<8x240xf32>
    %cst_11 = arith.constant dense<0.000000e+00> : vector<8x120xf32>
    %14 = tpu.matmul %13, %3, %cst_11 {dimension_numbers = #tpu.dot_dimension_numbers<[1], [0], [0], [1], [0, 0, 1, 1], [], []>} : vector<8x240xf32>, vector<240x120xf32>, vector<8x120xf32> -> vector<8x120xf32>
    %15 = vector.broadcast %4 : vector<1x120xf32> to vector<8x120xf32>
    %16 = arith.addf %14, %15 : vector<8x120xf32>
    %cst_12 = arith.constant 0.000000e+00 : f32
    %17 = vector.broadcast %cst_12 : f32 to vector<8x120xf32>
    %18 = arith.maximumf %16, %17 : vector<8x120xf32>
    %cst_13 = arith.constant dense<0.000000e+00> : vector<8x120xf32>
    %19 = tpu.matmul %18, %5, %cst_13 {dimension_numbers = #tpu.dot_dimension_numbers<[1], [0], [0], [1], [0, 0, 1, 1], [], []>} : vector<8x120xf32>, vector<120x120xf32>, vector<8x120xf32> -> vector<8x120xf32>
    %20 = vector.broadcast %6 : vector<1x120xf32> to vector<8x120xf32>
    %21 = arith.addf %19, %20 : vector<8x120xf32>
    %22 = vector.shape_cast %8 : vector<1x120xf32> to vector<1x120xf32>
    %23 = vector.broadcast %22 : vector<1x120xf32> to vector<8x120xf32>
    %24 = vector.extract_strided_slice %21 {offsets = [0, 1], sizes = [8, 119], strides = [1, 1]} : vector<8x120xf32> to vector<8x119xf32>
    %25 = vector.extract_strided_slice %21 {offsets = [0, 0], sizes = [8, 1], strides = [1, 1]} : vector<8x120xf32> to vector<8x1xf32>
    %26 = tpu.concatenate %24, %25 in 1 : vector<8x119xf32>, vector<8x1xf32> -> vector<8x120xf32>
    %cst_14 = arith.constant 9.000000e+00 : f32
    %27 = vector.broadcast %cst_14 : f32 to vector<8x120xf32>
    %28 = arith.cmpf olt, %23, %27 : vector<8x120xf32>
    %cst_15 = arith.constant -1.000000e+30 : f32
    %29 = vector.broadcast %cst_15 : f32 to vector<8x120xf32>
    %30 = arith.select %28, %26, %29 : vector<8x120xi1>, vector<8x120xf32>
    %31 = arith.maximumf %21, %30 : vector<8x120xf32>
    %32 = vector.extract_strided_slice %31 {offsets = [0, 2], sizes = [8, 118], strides = [1, 1]} : vector<8x120xf32> to vector<8x118xf32>
    %33 = vector.extract_strided_slice %31 {offsets = [0, 0], sizes = [8, 2], strides = [1, 1]} : vector<8x120xf32> to vector<8x2xf32>
    %34 = tpu.concatenate %32, %33 in 1 : vector<8x118xf32>, vector<8x2xf32> -> vector<8x120xf32>
    %cst_16 = arith.constant 8.000000e+00 : f32
    %35 = vector.broadcast %cst_16 : f32 to vector<8x120xf32>
    %36 = arith.cmpf olt, %23, %35 : vector<8x120xf32>
    %cst_17 = arith.constant -1.000000e+30 : f32
    %37 = vector.broadcast %cst_17 : f32 to vector<8x120xf32>
    %38 = arith.select %36, %34, %37 : vector<8x120xi1>, vector<8x120xf32>
    %39 = arith.maximumf %31, %38 : vector<8x120xf32>
    %40 = vector.extract_strided_slice %39 {offsets = [0, 4], sizes = [8, 116], strides = [1, 1]} : vector<8x120xf32> to vector<8x116xf32>
    %41 = vector.extract_strided_slice %39 {offsets = [0, 0], sizes = [8, 4], strides = [1, 1]} : vector<8x120xf32> to vector<8x4xf32>
    %42 = tpu.concatenate %40, %41 in 1 : vector<8x116xf32>, vector<8x4xf32> -> vector<8x120xf32>
    %cst_18 = arith.constant 6.000000e+00 : f32
    %43 = vector.broadcast %cst_18 : f32 to vector<8x120xf32>
    %44 = arith.cmpf olt, %23, %43 : vector<8x120xf32>
    %cst_19 = arith.constant -1.000000e+30 : f32
    %45 = vector.broadcast %cst_19 : f32 to vector<8x120xf32>
    %46 = arith.select %44, %42, %45 : vector<8x120xi1>, vector<8x120xf32>
    %47 = arith.maximumf %39, %46 : vector<8x120xf32>
    %48 = vector.extract_strided_slice %47 {offsets = [0, 8], sizes = [8, 112], strides = [1, 1]} : vector<8x120xf32> to vector<8x112xf32>
    %49 = vector.extract_strided_slice %47 {offsets = [0, 0], sizes = [8, 8], strides = [1, 1]} : vector<8x120xf32> to vector<8x8xf32>
    %50 = tpu.concatenate %48, %49 in 1 : vector<8x112xf32>, vector<8x8xf32> -> vector<8x120xf32>
    %cst_20 = arith.constant 2.000000e+00 : f32
    %51 = vector.broadcast %cst_20 : f32 to vector<8x120xf32>
    %52 = arith.cmpf olt, %23, %51 : vector<8x120xf32>
    %cst_21 = arith.constant -1.000000e+30 : f32
    %53 = vector.broadcast %cst_21 : f32 to vector<8x120xf32>
    %54 = arith.select %52, %50, %53 : vector<8x120xi1>, vector<8x120xf32>
    %55 = arith.maximumf %47, %54 : vector<8x120xf32>
    %cst_22 = arith.constant 0.000000e+00 : f32
    %56 = vector.broadcast %cst_22 : f32 to vector<8x120xf32>
    %57 = arith.cmpf oeq, %23, %56 : vector<8x120xf32>
    %cst_23 = arith.constant 0.000000e+00 : f32
    %58 = vector.broadcast %cst_23 : f32 to vector<8x120xf32>
    %59 = arith.select %57, %55, %58 : vector<8x120xi1>, vector<8x120xf32>
    %cst_24 = arith.constant dense<0.000000e+00> : vector<8x120xf32>
    %60 = tpu.matmul %59, %7, %cst_24 {dimension_numbers = #tpu.dot_dimension_numbers<[1], [0], [0], [1], [0, 0, 1, 1], [], []>} : vector<8x120xf32>, vector<120x120xf32>, vector<8x120xf32> -> vector<8x120xf32>
    %61 = arith.subf %21, %60 : vector<8x120xf32>
    %62 = math.exp %61 : vector<8x120xf32>
    %cst_25 = arith.constant dense<0.000000e+00> : vector<8x120xf32>
    %63 = tpu.matmul %62, %7, %cst_25 {dimension_numbers = #tpu.dot_dimension_numbers<[1], [0], [0], [1], [0, 0, 1, 1], [], []>} : vector<8x120xf32>, vector<120x120xf32>, vector<8x120xf32> -> vector<8x120xf32>
    %64 = math.log %63 : vector<8x120xf32>
    %65 = arith.subf %61, %64 : vector<8x120xf32>
    %c0_26 = arith.constant 0 : index
    %c0_27 = arith.constant 0 : index
    %66 = vector.load %arg3[%c0_26, %c0_27] : memref<8x120xf32, #tpu.memory_space<vmem>>, vector<8x120xf32>
    tpu.vector_store %arg3[%c0_26, %c0_27], %65 {strides = array<i32>} : memref<8x120xf32, #tpu.memory_space<vmem>>, vector<8x120xf32>,
    return
  }
  func.func @transform_0(%arg0: i32) -> (i32, i32) {
    %c0_i32 = arith.constant 0 : i32
    %c0_i32_0 = arith.constant 0 : i32
    return %arg0, %c0_i32 : i32, i32
  }
  func.func @transform_1(%arg0: i32) -> (i32, i32) {
    %c0_i32 = arith.constant 0 : i32
    %c0_i32_0 = arith.constant 0 : i32
    %c0_i32_1 = arith.constant 0 : i32
    return %c0_i32, %c0_i32_0 : i32, i32
  }
  func.func @transform_2(%arg0: i32) -> (i32, i32) {
    %c0_i32 = arith.constant 0 : i32
    %c0_i32_0 = arith.constant 0 : i32
    return %arg0, %c0_i32 : i32, i32
  }
}

</mosaic_0001>

<llo_original>
// kernel: _lambda_.1
$region0: #{_lambda_.1}
  #allocation0 [shape = 'u32[]', space=smem, size = 0x4, offset = 0x4, fixed_abs, tag = 'smem constant byte address 0x4 - core index']
  #allocation1 [shape = 'u32[144,128]{1,0:T(1,128)}', space=vmem, size = 0x12000, scoped, tag = 'internal scratch']
  %s0 = inlined_call_operand.vmem [shape: f32[16,240], index: 0, kind: input, shape index: {}]
  %s1 = inlined_call_operand.hbm [shape: f32[752,240], index: 1, kind: input, shape index: {}]
  %s2 = inlined_call_operand.vmem [shape: f32[16,120], index: 2, kind: output, shape index: {}]
  %s3 = sld [smem:[#allocation0]]
  $region45: #{_lambda_.1} parent=0
    _
  %s5 = ssub.s32 1, %s3
  %s6 = scalar_select 0, %s5, %s3
  $region1: #{_lambda_.1} parent=0
    #allocation2 [shape = 'u8[770048]{0}', space=vmem, size = 0xbc000, scoped, tag = 'input window, operand 1, single buffered']
    #allocation3 [shape = 's32[2]{0}', space=sflag, size = 0x8, scoped, tag = 'scoped memory for _lambda_.1']
    %7 = vsyncpa [#allocation3], 0
    loop: start=0, step=1, limit=4
    $region2: #{_lambda_.1} parent=1 // loop_pre_header
      _
    $region3: #{_lambda_.1} parent=1 // loop_header
      %s9 = sphi 0, %s13
      %p10 = scmp.ge.s32.totalorder %s9, 4
      %s19 = sphi 0, %s21
      %s22 = sphi 0, %s19
      %s23 = sphi 0, %s22
      %s39 = sphi 0, %s23
      %s43 = sphi 0, %s43
      %s45 = sphi 0, %s43
      %s46 = sphi 0, %s45
      %s60 = sphi 0, %s46
      %s66 = sphi 0, %s68
      %s69 = sphi 0, %s66
      %s70 = sphi 0, %s69
      %s86 = sphi 0, %s70
    $region4: #{_lambda_.1} parent=1 // loop_header_branch
      %12 = sbr.rel (%p10) target = $region8
    $region5: #{_lambda_.1} parent=1 // loop_body
      %s14 = ssub.s32 %s9, 1
      %s15 = ssub.s32 %s9, 2
      %s16 = sadd.s32 %s9, 1
      %s17 = ssub.s32 %s9, %s16
      %p18 = scmp.eq.s32.totalorder %s17, 0
      %s20 = sadd.s32 %s19, 1
      %s21 = scalar_select %p18, %s19, %s20
      %p24 = pneg %p18
      %p25 = scmp.eq.s32.totalorder %s9, 1
      %p26 = por %p24, %p25
      %p27 = scmp.ne.s32.totalorder %s19, %s22
      %p28 = scmp.eq.s32.totalorder %s9, 0
      %p29 = por %p27, %p28
      %p30 = scmp.ne.s32.totalorder %s19, %s22
      %p31 = scmp.eq.s32.totalorder %s14, 1
      %p32 = por %p30, %p31
      %p33 = scmp.ne.s32.totalorder %s22, %s23
      %p34 = scmp.eq.s32.totalorder %s14, 0
      %p35 = por %p33, %p34
      %p36 = scmp.ne.s32.totalorder %s22, %s23
      %p37 = scmp.eq.s32.totalorder %s15, 1
      %p38 = por %p36, %p37
      %p40 = scmp.ne.s32.totalorder %s23, %s39
      %p41 = scmp.eq.s32.totalorder %s15, 0
      %p42 = por %p40, %p41
      %s44 = sadd.s32 %s43, 1
      %p47 = scmp.eq.s32.totalorder %s9, 1
      %p48 = scmp.ne.s32.totalorder %s43, %s45
      %p49 = scmp.eq.s32.totalorder %s9, 0
      %p50 = por %p48, %p49
      %p51 = scmp.ne.s32.totalorder %s43, %s45
      %p52 = scmp.eq.s32.totalorder %s14, 1
      %p53 = por %p51, %p52
      %p54 = scmp.ne.s32.totalorder %s45, %s46
      %p55 = scmp.eq.s32.totalorder %s14, 0
      %p56 = por %p54, %p55
      %p57 = scmp.ne.s32.totalorder %s45, %s46
      %p58 = scmp.eq.s32.totalorder %s15, 1
      %p59 = por %p57, %p58
      %p61 = scmp.ne.s32.totalorder %s46, %s60
      %p62 = scmp.eq.s32.totalorder %s15, 0
      %p63 = por %p61, %p62
      %s64 = ssub.s32 %s9, %s16
      %p65 = scmp.eq.s32.totalorder %s64, 0
      %s67 = sadd.s32 %s66, 1
      %s68 = scalar_select %p65, %s66, %s67
      %p71 = pneg %p65
      %p72 = scmp.eq.s32.totalorder %s9, 1
      %p73 = por %p71, %p72
      %p74 = scmp.ne.s32.totalorder %s66, %s69
      %p75 = scmp.eq.s32.totalorder %s9, 0
      %p76 = por %p74, %p75
      %p77 = scmp.ne.s32.totalorder %s66, %s69
      %p78 = scmp.eq.s32.totalorder %s14, 1
      %p79 = por %p77, %p78
      %p80 = scmp.ne.s32.totalorder %s69, %s70
      %p81 = scmp.eq.s32.totalorder %s14, 0
      %p82 = por %p80, %p81
      %p83 = scmp.ne.s32.totalorder %s69, %s70
      %p84 = scmp.eq.s32.totalorder %s15, 1
      %p85 = por %p83, %p84
      %p87 = scmp.ne.s32.totalorder %s70, %s86
      %p88 = scmp.eq.s32.totalorder %s15, 0
      %p89 = por %p87, %p88
      %p90 = scmp.le.s32.totalorder 1, %s9
      %p91 = scmp.lt.s32.totalorder %s9, 3
      %p92 = pnand %p90, %p91
      %p93 = pneg %p92
      // Predicated region
      $region9: #{_lambda_.1} parent=5 // pred_check
        _
      $region10: #{_lambda_.1} parent=5 // pred_check_branch
        %95 = sbr.rel (%p92) target = $region12
      $region11: #{_lambda_.1} parent=5 // pred_region
        %s96 = ssub.s32 %s9, 1
        // Predicated region
        $region13: #{_lambda_.1} parent=11 // pred_check
          %p97 = pneg %p56
        $region14: #{_lambda_.1} parent=11 // pred_check_branch
          %99 = sbr.rel (%p97) target = $region16
        $region15: #{_lambda_.1} parent=11 // pred_region
          %s101 = ssub.s32 24064, 24064
          %102 = vsyncadd [#allocation3], %s101
          %s103 = sshll.u32 [#allocation2], 4
          %s104 = int_to_ptr.vmem [resolvable:$true] %s103
          %109 = dma.hbm_to_vmem [thread:$0]  %s1, 24064, %s104, [#allocation3], 256, 256, 16
        $region16: #{_lambda_.1} parent=11 // pred_fallthru
          _
      $region12: #{_lambda_.1} parent=5 // pred_fallthru
        _
      %p110 = scmp.lt.s32.totalorder %s9, 2
      // Predicated region
      $region17: #{_lambda_.1} parent=5 // pred_check
        %p111 = pneg %p110
      $region18: #{_lambda_.1} parent=5 // pred_check_branch
        %113 = sbr.rel (%p111) target = $region20
      $region19: #{_lambda_.1} parent=5 // pred_region
        // Predicated region
        $region21: #{_lambda_.1} parent=19 // pred_check
          %p114 = pneg %p29
        $region22: #{_lambda_.1} parent=19 // pred_check_branch
          %116 = sbr.rel (%p114) target = $region24
        $region23: #{_lambda_.1} parent=19 // pred_region
          %p117 = scmp.lt.s32.totalorder %s9, 1
          %s118 = scalar_select %p117, %s9, 1
          %s119 = smul.addr %s118, 2
          %s120 = smul.addr %s119, 8
          %s121 = scalar_lea.vmem %s0, %s120
        $region24: #{_lambda_.1} parent=19 // pred_fallthru
          _
      $region20: #{_lambda_.1} parent=5 // pred_fallthru
        _
      %p122 = scmp.le.s32.totalorder 1, %s9
      %p123 = scmp.lt.s32.totalorder %s9, 3
      %p124 = pnand %p122, %p123
      %p125 = pneg %p124
      // Predicated region
      $region25: #{_lambda_.1} parent=5 // pred_check
        _
      $region26: #{_lambda_.1} parent=5 // pred_check_branch
        %127 = sbr.rel (%p124) target = $region28
      $region27: #{_lambda_.1} parent=5 // pred_region
        %s128 = ssub.s32 %s9, 1
        // Predicated region
        $region29: #{_lambda_.1} parent=27 // pred_check
          %p129 = pneg %p56
        $region30: #{_lambda_.1} parent=27 // pred_check_branch
          %131 = sbr.rel (%p129) target = $region32
        $region31: #{_lambda_.1} parent=27 // pred_region
          %132 = dma.done [#allocation3], 24064
        $region32: #{_lambda_.1} parent=27 // pred_fallthru
          _
        %p133 = scmp.lt.s32.totalorder %s14, 1
        %s134 = scalar_select %p133, %s14, 1
        %s135 = smul.addr %s134, 2
        %s136 = smul.addr %s135, 8
        %s137 = scalar_lea.vmem %s0, %s136
        %p138 = pneg %p35
        %p139 = pneg %p32
        %p140 = pneg %p56
        %p141 = pneg %p53
        %p142 = pneg %p82
        %p143 = pneg %p79
        %p144 = scmp.lt.s32.totalorder %s14, 1
        %s145 = scalar_select %p144, %s14, 1
        %s146 = smul.addr %s145, 8
        %s147 = scalar_lea.vmem %s2, %s146
        %p148 = scmp.lt.s32.totalorder %s14, 1
        %s149 = scalar_select %p148, %s14, 1
        %s150 = smul.addr %s149, 2
        %s151 = smul.addr %s150, 8
        %s152 = scalar_lea.vmem %s0, %s151
        %p153 = scmp.lt.s32.totalorder %s14, 1
        %s154 = scalar_select %p153, %s14, 1
        %s155 = smul.addr %s154, 8
        %s156 = scalar_lea.vmem %s2, %s155
        %v157 = vld [vmem:[%s152] sm:$0xff]
        %v158 = vld [vmem:[%s152 + $0x8] sm:$0xff]
        %v159 = vld [vmem:[#allocation2] sm:$0xff]
        %v160 = vld [vmem:[#allocation2 + $0x8] sm:$0xff]
        %v161 = vld [vmem:[#allocation2 + $0x10] sm:$0xff]
        %v162 = vld [vmem:[#allocation2 + $0x18] sm:$0xff]
        %v163 = vld [vmem:[#allocation2 + $0x20] sm:$0xff]
        %v164 = vld [vmem:[#allocation2 + $0x28] sm:$0xff]
        %v165 = vld [vmem:[#allocation2 + $0x30] sm:$0xff]
        %v166 = vld [vmem:[#allocation2 + $0x38] sm:$0xff]
        %v167 = vld [vmem:[#allocation2 + $0x40] sm:$0xff]
        %v168 = vld [vmem:[#allocation2 + $0x48] sm:$0xff]
        %v169 = vld [vmem:[#allocation2 + $0x50] sm:$0xff]
        %v170 = vld [vmem:[#allocation2 + $0x58] sm:$0xff]
        %v171 = vld [vmem:[#allocation2 + $0x60] sm:$0xff]
        %v172 = vld [vmem:[#allocation2 + $0x68] sm:$0xff]
        %v173 = vld [vmem:[#allocation2 + $0x70] sm:$0xff]
        %v174 = vld [vmem:[#allocation2 + $0x78] sm:$0xff]
        %v175 = vld [vmem:[#allocation2 + $0x80] sm:$0xff]
        %v176 = vld [vmem:[#allocation2 + $0x88] sm:$0xff]
        %v177 = vld [vmem:[#allocation2 + $0x90] sm:$0xff]
        %v178 = vld [vmem:[#allocation2 + $0x98] sm:$0xff]
        %v179 = vld [vmem:[#allocation2 + $0xa0] sm:$0xff]
        %v180 = vld [vmem:[#allocation2 + $0xa8] sm:$0xff]
        %v181 = vld [vmem:[#allocation2 + $0xb0] sm:$0xff]
        %v182 = vld [vmem:[#allocation2 + $0xb8] sm:$0xff]
        %v183 = vld [vmem:[#allocation2 + $0xc0] sm:$0xff]
        %v184 = vld [vmem:[#allocation2 + $0xc8] sm:$0xff]
        %v185 = vld [vmem:[#allocation2 + $0xd0] sm:$0xff]
        %v186 = vld [vmem:[#allocation2 + $0xd8] sm:$0xff]
        %v187 = vld [vmem:[#allocation2 + $0xe0] sm:$0xff]
        %v188 = vld [vmem:[#allocation2 + $0xe8] sm:$0xff]
        %v189 = vld [vmem:[#allocation2 + $0xf0] sm:$0xff]
        %v190 = vld [vmem:[#allocation2 + $0xf8] sm:$0xff]
        %v191 = vld [vmem:[#allocation2 + $0x100] sm:$0xff]
        %v192 = vld [vmem:[#allocation2 + $0x108] sm:$0xff]
        %v193 = vld [vmem:[#allocation2 + $0x110] sm:$0xff]
        %v194 = vld [vmem:[#allocation2 + $0x118] sm:$0xff]
        %v195 = vld [vmem:[#allocation2 + $0x120] sm:$0xff]
        %v196 = vld [vmem:[#allocation2 + $0x128] sm:$0xff]
        %v197 = vld [vmem:[#allocation2 + $0x130] sm:$0xff]
        %v198 = vld [vmem:[#allocation2 + $0x138] sm:$0xff]
        %v199 = vld [vmem:[#allocation2 + $0x140] sm:$0xff]
        %v200 = vld [vmem:[#allocation2 + $0x148] sm:$0xff]
        %v201 = vld [vmem:[#allocation2 + $0x150] sm:$0xff]
        %v202 = vld [vmem:[#allocation2 + $0x158] sm:$0xff]
        %v203 = vld [vmem:[#allocation2 + $0x160] sm:$0xff]
        %v204 = vld [vmem:[#allocation2 + $0x168] sm:$0xff]
        %v205 = vld [vmem:[#allocation2 + $0x170] sm:$0xff]
        %v206 = vld [vmem:[#allocation2 + $0x178] sm:$0xff]
        %v207 = vld [vmem:[#allocation2 + $0x180] sm:$0xff]
        %v208 = vld [vmem:[#allocation2 + $0x188] sm:$0xff]
        %v209 = vld [vmem:[#allocation2 + $0x190] sm:$0xff]
        %v210 = vld [vmem:[#allocation2 + $0x198] sm:$0xff]
        %v211 = vld [vmem:[#allocation2 + $0x1a0] sm:$0xff]
        %v212 = vld [vmem:[#allocation2 + $0x1a8] sm:$0xff]
        %v213 = vld [vmem:[#allocation2 + $0x1b0] sm:$0xff]
        %v214 = vld [vmem:[#allocation2 + $0x1b8] sm:$0xff]
        %v215 = vld [vmem:[#allocation2 + $0x1c0] sm:$0xff]
        %v216 = vld [vmem:[#allocation2 + $0x1c8] sm:$0xff]
        %v217 = vld [vmem:[#allocation2 + $0x1d0] sm:$0xff]
        %v218 = vld [vmem:[#allocation2 + $0x1d8] sm:$0xff]
        %s219 = scalar_lea.vmem [#allocation2], 480
        %v220 = vld [vmem:[%s219] ss:$8 sm:$0x3]
        %v221 = vld [vmem:[#allocation2 + $0x1f0] sm:$0xff]
        %v222 = vld [vmem:[#allocation2 + $0x200] sm:$0xff]
        %v223 = vld [vmem:[#allocation2 + $0x210] sm:$0xff]
        %v224 = vld [vmem:[#allocation2 + $0x220] sm:$0xff]
        %v225 = vld [vmem:[#allocation2 + $0x230] sm:$0xff]
        %v226 = vld [vmem:[#allocation2 + $0x240] sm:$0xff]
        %v227 = vld [vmem:[#allocation2 + $0x250] sm:$0xff]
        %v228 = vld [vmem:[#allocation2 + $0x260] sm:$0xff]
        %v229 = vld [vmem:[#allocation2 + $0x270] sm:$0xff]
        %v230 = vld [vmem:[#allocation2 + $0x280] sm:$0xff]
        %v231 = vld [vmem:[#allocation2 + $0x290] sm:$0xff]
        %v232 = vld [vmem:[#allocation2 + $0x2a0] sm:$0xff]
        %v233 = vld [vmem:[#allocation2 + $0x2b0] sm:$0xff]
        %v234 = vld [vmem:[#allocation2 + $0x2c0] sm:$0xff]
        %v235 = vld [vmem:[#allocation2 + $0x2d0] sm:$0xff]
        %v236 = vld [vmem:[#allocation2 + $0x2e0] sm:$0xff]
        %v237 = vld [vmem:[#allocation2 + $0x2f0] sm:$0xff]
        %v238 = vld [vmem:[#allocation2 + $0x300] sm:$0xff]
        %v239 = vld [vmem:[#allocation2 + $0x310] sm:$0xff]
        %v240 = vld [vmem:[#allocation2 + $0x320] sm:$0xff]
        %v241 = vld [vmem:[#allocation2 + $0x330] sm:$0xff]
        %v242 = vld [vmem:[#allocation2 + $0x340] sm:$0xff]
        %v243 = vld [vmem:[#allocation2 + $0x350] sm:$0xff]
        %v244 = vld [vmem:[#allocation2 + $0x360] sm:$0xff]
        %v245 = vld [vmem:[#allocation2 + $0x370] sm:$0xff]
        %v246 = vld [vmem:[#allocation2 + $0x380] sm:$0xff]
        %v247 = vld [vmem:[#allocation2 + $0x390] sm:$0xff]
        %v248 = vld [vmem:[#allocation2 + $0x3a0] sm:$0xff]
        %v249 = vld [vmem:[#allocation2 + $0x3b0] sm:$0xff]
        %v250 = vld [vmem:[#allocation2 + $0x3c0] sm:$0xff]
        %v251 = vld [vmem:[#allocation2 + $0x3d0] ss:$0 sm:$0xff]
        %v252 = vld [vmem:[#allocation2 + $0x3e0] sm:$0xff]
        %v253 = vld [vmem:[#allocation2 + $0x3f0] sm:$0xff]
        %v254 = vld [vmem:[#allocation2 + $0x400] sm:$0xff]
        %v255 = vld [vmem:[#allocation2 + $0x410] sm:$0xff]
        %v256 = vld [vmem:[#allocation2 + $0x420] sm:$0xff]
        %v257 = vld [vmem:[#allocation2 + $0x430] sm:$0xff]
        %v258 = vld [vmem:[#allocation2 + $0x440] sm:$0xff]
        %v259 = vld [vmem:[#allocation2 + $0x450] sm:$0xff]
        %v260 = vld [vmem:[#allocation2 + $0x460] sm:$0xff]
        %v261 = vld [vmem:[#allocation2 + $0x470] sm:$0xff]
        %v262 = vld [vmem:[#allocation2 + $0x480] sm:$0xff]
        %v263 = vld [vmem:[#allocation2 + $0x490] sm:$0xff]
        %v264 = vld [vmem:[#allocation2 + $0x4a0] sm:$0xff]
        %v265 = vld [vmem:[#allocation2 + $0x4b0] sm:$0xff]
        %v266 = vld [vmem:[#allocation2 + $0x4c0] sm:$0xff]
        %v267 = vld [vmem:[#allocation2 + $0x4d0] ss:$0 sm:$0xff]
        %v268 = vld [vmem:[#allocation2 + $0x4e0] sm:$0xff]
        %v269 = vld [vmem:[#allocation2 + $0x4f0] sm:$0xff]
        %v270 = vld [vmem:[#allocation2 + $0x500] sm:$0xff]
        %v271 = vld [vmem:[#allocation2 + $0x510] sm:$0xff]
        %v272 = vld [vmem:[#allocation2 + $0x520] sm:$0xff]
        %v273 = vld [vmem:[#allocation2 + $0x530] sm:$0xff]
        %v274 = vld [vmem:[#allocation2 + $0x540] sm:$0xff]
        %v275 = vld [vmem:[#allocation2 + $0x550] sm:$0xff]
        %v276 = vld [vmem:[#allocation2 + $0x560] sm:$0xff]
        %v277 = vld [vmem:[#allocation2 + $0x570] sm:$0xff]
        %v278 = vld [vmem:[#allocation2 + $0x580] sm:$0xff]
        %v279 = vld [vmem:[#allocation2 + $0x590] sm:$0xff]
        %v280 = vld [vmem:[#allocation2 + $0x5a0] sm:$0xff]
        %v281 = vld [vmem:[#allocation2 + $0x5b0] sm:$0xff]
        %v282 = vld [vmem:[#allocation2 + $0x5c0] sm:$0xff]
        %v283 = vld [vmem:[#allocation2 + $0x5d0] ss:$0 sm:$0xff]
        %v285 = vlaneseq
        %v286 = vshrl.u32 %v285, 7
        %v287 = vsub.s32 0, %v286
        %v288 = vrot.slane %v220, %v287
        %v289 = vlaneseq
        %v290 = vshrl.u32 %v289, 7
        %v291 = vsub.s32 1, %v290
        %v292 = vrot.slane %v220, %v291
        %vm295 = vcmask 916480
        %v297 = vsel %vm295, %v158, 0
        %299 = vmatprep.subr.mxu0 %v160
        %300 = vmatpush1.msra.mxu0 %v159
        %301 = vmatprep.subr.mxu0 %v162
        %302 = vmatpush1.msra.mxu0 %v161
        %303 = vmatprep.subr.mxu0 %v164
        %304 = vmatpush1.msra.mxu0 %v163
        %305 = vmatprep.subr.mxu0 %v166
        %306 = vmatpush1.msra.mxu0 %v165
        %307 = vmatprep.subr.mxu0 %v168
        %308 = vmatpush1.msra.mxu0 %v167
        %309 = vmatprep.subr.mxu0 %v170
        %310 = vmatpush1.msra.mxu0 %v169
        %311 = vmatprep.subr.mxu0 %v172
        %312 = vmatpush1.msra.mxu0 %v171
        %313 = vmatprep.subr.mxu0 %v174
        %314 = vmatpush1.msra.mxu0 %v173
        %315 = vmatprep.subr.mxu0 %v176
        %316 = vmatpush1.msra.mxu0 %v175
        %317 = vmatprep.subr.mxu0 %v178
        %318 = vmatpush1.msra.mxu0 %v177
        %319 = vmatprep.subr.mxu0 %v180
        %320 = vmatpush1.msra.mxu0 %v179
        %321 = vmatprep.subr.mxu0 %v182
        %322 = vmatpush1.msra.mxu0 %v181
        %323 = vmatprep.subr.mxu0 %v184
        %324 = vmatpush1.msra.mxu0 %v183
        %325 = vmatprep.subr.mxu0 %v186
        %326 = vmatpush1.msra.mxu0 %v185
        %327 = vmatprep.subr.mxu0 %v188
        %328 = vmatpush1.msra.mxu0 %v187
        %329 = vmatprep.subr.mxu0 %v190
        %330 = vmatpush1.msra.mxu0 %v189
        %331 = vmatprep.subr.mxu0 %v192
        %332 = vmatpush1.msra.mxu0 %v191
        %333 = vmatprep.subr.mxu0 %v194
        %334 = vmatpush1.msra.mxu0 %v193
        %335 = vmatprep.subr.mxu0 %v196
        %336 = vmatpush1.msra.mxu0 %v195
        %337 = vmatprep.subr.mxu0 %v198
        %338 = vmatpush1.msra.mxu0 %v197
        %339 = vmatprep.subr.mxu0 %v200
        %340 = vmatpush1.msra.mxu0 %v199
        %341 = vmatprep.subr.mxu0 %v202
        %342 = vmatpush1.msra.mxu0 %v201
        %343 = vmatprep.subr.mxu0 %v204
        %344 = vmatpush1.msra.mxu0 %v203
        %345 = vmatprep.subr.mxu0 %v206
        %346 = vmatpush1.msra.mxu0 %v205
        %347 = vmatprep.subr.mxu0 %v208
        %348 = vmatpush1.msra.mxu0 %v207
        %349 = vmatprep.subr.mxu0 %v210
        %350 = vmatpush1.msra.mxu0 %v209
        %351 = vmatprep.subr.mxu0 %v212
        %352 = vmatpush1.msra.mxu0 %v211
        %353 = vmatprep.subr.mxu0 %v214
        %354 = vmatpush1.msra.mxu0 %v213
        %355 = vmatprep.subr.mxu0 %v216
        %356 = vmatpush1.msra.mxu0 %v215
        %357 = vmatprep.subr.mxu0 %v218
        %358 = vmatpush1.msra.mxu0 %v217
        %359 = vmatprep.subr.mxu0 0.0
        %360 = vmatpush1.msra.mxu0 0.0
        %361 = vmatprep.subr.mxu0 0.0
        %362 = vmatpush1.msra.mxu0 0.0
        %363 = vmatprep.mubr.f32.mxu0 %v297
        %364 = vmatmul.mubr.f32.gmra.mrb[0].mxu0 %v157
        %v365 = vpop.f32.mrb[0].mxu0
        %v366 = vadd.f32 %v288, %v365
        %v367 = vpop.f32.mrb[0].mxu0
        %v368 = vadd.f32 %v292, %v367
        %369 = vdwg.mxu0
        %v370 = vmax.f32 %v366, 0.0
        %v371 = vmax.f32 %v368, 0.0
        %v373 = vsel %vm295, %v371, 0
        %375 = vmatprep.subr.mxu0 0.0
        %376 = vmatpush1.msra.mxu0 %v221
        %377 = vmatprep.subr.mxu0 0.0
        %378 = vmatpush1.msra.mxu0 %v222
        %379 = vmatprep.subr.mxu0 0.0
        %380 = vmatpush1.msra.mxu0 %v223
        %381 = vmatprep.subr.mxu0 0.0
        %382 = vmatpush1.msra.mxu0 %v224
        %383 = vmatprep.subr.mxu0 0.0
        %384 = vmatpush1.msra.mxu0 %v225
        %385 = vmatprep.subr.mxu0 0.0
        %386 = vmatpush1.msra.mxu0 %v226
        %387 = vmatprep.subr.mxu0 0.0
        %388 = vmatpush1.msra.mxu0 %v227
        %389 = vmatprep.subr.mxu0 0.0
        %390 = vmatpush1.msra.mxu0 %v228
        %391 = vmatprep.subr.mxu0 0.0
        %392 = vmatpush1.msra.mxu0 %v229
        %393 = vmatprep.subr.mxu0 0.0
        %394 = vmatpush1.msra.mxu0 %v230
        %395 = vmatprep.subr.mxu0 0.0
        %396 = vmatpush1.msra.mxu0 %v231
        %397 = vmatprep.subr.mxu0 0.0
        %398 = vmatpush1.msra.mxu0 %v232
        %399 = vmatprep.subr.mxu0 0.0
        %400 = vmatpush1.msra.mxu0 %v233
        %401 = vmatprep.subr.mxu0 0.0
        %402 = vmatpush1.msra.mxu0 %v234
        %403 = vmatprep.subr.mxu0 0.0
        %404 = vmatpush1.msra.mxu0 %v235
        %405 = vmatprep.subr.mxu0 0.0
        %406 = vmatpush1.msra.mxu0 %v236
        %407 = vmatprep.subr.mxu0 0.0
        %408 = vmatpush1.msra.mxu0 %v237
        %409 = vmatprep.subr.mxu0 0.0
        %410 = vmatpush1.msra.mxu0 %v238
        %411 = vmatprep.subr.mxu0 0.0
        %412 = vmatpush1.msra.mxu0 %v239
        %413 = vmatprep.subr.mxu0 0.0
        %414 = vmatpush1.msra.mxu0 %v240
        %415 = vmatprep.subr.mxu0 0.0
        %416 = vmatpush1.msra.mxu0 %v241
        %417 = vmatprep.subr.mxu0 0.0
        %418 = vmatpush1.msra.mxu0 %v242
        %419 = vmatprep.subr.mxu0 0.0
        %420 = vmatpush1.msra.mxu0 %v243
        %421 = vmatprep.subr.mxu0 0.0
        %422 = vmatpush1.msra.mxu0 %v244
        %423 = vmatprep.subr.mxu0 0.0
        %424 = vmatpush1.msra.mxu0 %v245
        %425 = vmatprep.subr.mxu0 0.0
        %426 = vmatpush1.msra.mxu0 %v246
        %427 = vmatprep.subr.mxu0 0.0
        %428 = vmatpush1.msra.mxu0 %v247
        %429 = vmatprep.subr.mxu0 0.0
        %430 = vmatpush1.msra.mxu0 %v248
        %431 = vmatprep.subr.mxu0 0.0
        %432 = vmatpush1.msra.mxu0 %v249
        %433 = vmatprep.subr.mxu0 0.0
        %434 = vmatpush1.msra.mxu0 %v250
        %435 = vmatprep.subr.mxu0 0.0
        %436 = vmatpush1.msra.mxu0 0.0
        %437 = vmatprep.subr.mxu0 0.0
        %438 = vmatpush1.msra.mxu0 0.0
        %439 = vmatprep.mubr.f32.mxu0 %v373
        %440 = vmatmul.mubr.f32.gmra.mrb[0].mxu0 %v370
        %v441 = vpop.f32.mrb[0].mxu0
        %v442 = vadd.f32 %v251, %v441
        %v443 = vpop.f32.mrb[0].mxu0
        %444 = vdwg.mxu0
        %v445 = vmax.f32 %v442, 0.0
        %vm446 = vcmask 982016
        %v448 = vsel %vm446, %v445, 0
        %450 = vmatprep.subr.mxu0 0.0
        %451 = vmatpush1.msra.mxu0 %v252
        %452 = vmatprep.subr.mxu0 0.0
        %453 = vmatpush1.msra.mxu0 %v253
        %454 = vmatprep.subr.mxu0 0.0
        %455 = vmatpush1.msra.mxu0 %v254
        %456 = vmatprep.subr.mxu0 0.0
        %457 = vmatpush1.msra.mxu0 %v255
        %458 = vmatprep.subr.mxu0 0.0
        %459 = vmatpush1.msra.mxu0 %v256
        %460 = vmatprep.subr.mxu0 0.0
        %461 = vmatpush1.msra.mxu0 %v257
        %462 = vmatprep.subr.mxu0 0.0
        %463 = vmatpush1.msra.mxu0 %v258
        %464 = vmatprep.subr.mxu0 0.0
        %465 = vmatpush1.msra.mxu0 %v259
        %466 = vmatprep.subr.mxu0 0.0
        %467 = vmatpush1.msra.mxu0 %v260
        %468 = vmatprep.subr.mxu0 0.0
        %469 = vmatpush1.msra.mxu0 %v261
        %470 = vmatprep.subr.mxu0 0.0
        %471 = vmatpush1.msra.mxu0 %v262
        %472 = vmatprep.subr.mxu0 0.0
        %473 = vmatpush1.msra.mxu0 %v263
        %474 = vmatprep.subr.mxu0 0.0
        %475 = vmatpush1.msra.mxu0 %v264
        %476 = vmatprep.subr.mxu0 0.0
        %477 = vmatpush1.msra.mxu0 %v265
        %478 = vmatprep.subr.mxu0 0.0
        %479 = vmatpush1.msra.mxu0 %v266
        %480 = vmatprep.subr.mxu0 0.0
        %481 = vmatpush1.msra.mxu0 0.0
        %482 = vmatprep.subr.mxu0 0.0
        %483 = vmatpush1.msra.mxu0 0.0
        %484 = vmatprep.subr.mxu0 0.0
        %485 = vmatpush1.msra.mxu0 0.0
        %486 = vmatprep.subr.mxu0 0.0
        %487 = vmatpush1.msra.mxu0 0.0
        %488 = vmatprep.subr.mxu0 0.0
        %489 = vmatpush1.msra.mxu0 0.0
        %490 = vmatprep.subr.mxu0 0.0
        %491 = vmatpush1.msra.mxu0 0.0
        %492 = vmatprep.subr.mxu0 0.0
        %493 = vmatpush1.msra.mxu0 0.0
        %494 = vmatprep.subr.mxu0 0.0
        %495 = vmatpush1.msra.mxu0 0.0
        %496 = vmatprep.subr.mxu0 0.0
        %497 = vmatpush1.msra.mxu0 0.0
        %498 = vmatprep.subr.mxu0 0.0
        %499 = vmatpush1.msra.mxu0 0.0
        %500 = vmatprep.subr.mxu0 0.0
        %501 = vmatpush1.msra.mxu0 0.0
        %502 = vmatprep.subr.mxu0 0.0
        %503 = vmatpush1.msra.mxu0 0.0
        %504 = vmatprep.subr.mxu0 0.0
        %505 = vmatpush1.msra.mxu0 0.0
        %506 = vmatprep.subr.mxu0 0.0
        %507 = vmatpush1.msra.mxu0 0.0
        %508 = vmatprep.subr.mxu0 0.0
        %509 = vmatpush1.msra.mxu0 0.0
        %510 = vmatprep.subr.mxu0 0.0
        %511 = vmatpush1.msra.mxu0 0.0
        %512 = vmatprep.subr.mxu0 0.0
        %513 = vmatpush1.msra.mxu0 0.0
        %514 = vmatprep.mubr.f32.mxu0 0.0
        %515 = vmatmul.mubr.f32.gmra.mrb[0].mxu0 %v448
        %v516 = vpop.f32.mrb[0].mxu0
        %v517 = vadd.f32 %v267, %v516
        %v518 = vpop.f32.mrb[0].mxu0
        %519 = vdwg.mxu0
        %521 = vrot.lane.b32.xlu0 %v517, 127
        %v522 = vpop.permute.xlu0 %521
        %524 = vrot.lane.b32.xlu0 %v517, 119
        %v525 = vpop.permute.xlu0 %524
        %vm527 = vcmask 973824
        %v528 = vsel %vm527, %v522, %v525
        %vm529 = vcmp.lt.f32.partialorder %v283, 9.0
        %v530 = vsel %vm529, %v528, -1e+30
        %v531 = vmax.f32 %v517, %v530
        %533 = vrot.lane.b32.xlu0 %v531, 126
        %v534 = vpop.permute.xlu0 %533
        %536 = vrot.lane.b32.xlu0 %v531, 118
        %v537 = vpop.permute.xlu0 %536
        %vm539 = vcmask 965632
        %v540 = vsel %vm539, %v534, %v537
        %vm541 = vcmp.lt.f32.partialorder %v283, 8.0
        %v542 = vsel %vm541, %v540, -1e+30
        %v543 = vmax.f32 %v531, %v542
        %545 = vrot.lane.b32.xlu0 %v543, 124
        %v546 = vpop.permute.xlu0 %545
        %548 = vrot.lane.b32.xlu0 %v543, 116
        %v549 = vpop.permute.xlu0 %548
        %vm551 = vcmask 949248
        %v552 = vsel %vm551, %v546, %v549
        %vm553 = vcmp.lt.f32.partialorder %v283, 6.0
        %v554 = vsel %vm553, %v552, -1e+30
        %v555 = vmax.f32 %v543, %v554
        %557 = vrot.lane.b32.xlu0 %v555, 120
        %v558 = vpop.permute.xlu0 %557
        %560 = vrot.lane.b32.xlu0 %v555, 112
        %v561 = vpop.permute.xlu0 %560
        %v563 = vsel %vm295, %v558, %v561
        %vm564 = vcmp.lt.f32.partialorder %v283, 2.0
        %v565 = vsel %vm564, %v563, -1e+30
        %v566 = vmax.f32 %v555, %v565
        %vm567 = vcmp.eq.f32.partialorder %v283, 0.0
        %v568 = vsel %vm567, %v566, 0.0
        %v570 = vsel %vm446, %v568, 0
        %572 = vmatprep.subr.mxu0 0.0
        %573 = vmatpush1.msra.mxu0 %v268
        %574 = vmatprep.subr.mxu0 0.0
        %575 = vmatpush1.msra.mxu0 %v269
        %576 = vmatprep.subr.mxu0 0.0
        %577 = vmatpush1.msra.mxu0 %v270
        %578 = vmatprep.subr.mxu0 0.0
        %579 = vmatpush1.msra.mxu0 %v271
        %580 = vmatprep.subr.mxu0 0.0
        %581 = vmatpush1.msra.mxu0 %v272
        %582 = vmatprep.subr.mxu0 0.0
        %583 = vmatpush1.msra.mxu0 %v273
        %584 = vmatprep.subr.mxu0 0.0
        %585 = vmatpush1.msra.mxu0 %v274
        %586 = vmatprep.subr.mxu0 0.0
        %587 = vmatpush1.msra.mxu0 %v275
        %588 = vmatprep.subr.mxu0 0.0
        %589 = vmatpush1.msra.mxu0 %v276
        %590 = vmatprep.subr.mxu0 0.0
        %591 = vmatpush1.msra.mxu0 %v277
        %592 = vmatprep.subr.mxu0 0.0
        %593 = vmatpush1.msra.mxu0 %v278
        %594 = vmatprep.subr.mxu0 0.0
        %595 = vmatpush1.msra.mxu0 %v279
        %596 = vmatprep.subr.mxu0 0.0
        %597 = vmatpush1.msra.mxu0 %v280
        %598 = vmatprep.subr.mxu0 0.0
        %599 = vmatpush1.msra.mxu0 %v281
        %600 = vmatprep.subr.mxu0 0.0
        %601 = vmatpush1.msra.mxu0 %v282
        %602 = vmatprep.subr.mxu0 0.0
        %603 = vmatpush1.msra.mxu0 0.0
        %604 = vmatprep.subr.mxu0 0.0
        %605 = vmatpush1.msra.mxu0 0.0
        %606 = vmatprep.subr.mxu0 0.0
        %607 = vmatpush1.msra.mxu0 0.0
        %608 = vmatprep.subr.mxu0 0.0
        %609 = vmatpush1.msra.mxu0 0.0
        %610 = vmatprep.subr.mxu0 0.0
        %611 = vmatpush1.msra.mxu0 0.0
        %612 = vmatprep.subr.mxu0 0.0
        %613 = vmatpush1.msra.mxu0 0.0
        %614 = vmatprep.subr.mxu0 0.0
        %615 = vmatpush1.msra.mxu0 0.0
        %616 = vmatprep.subr.mxu0 0.0
        %617 = vmatpush1.msra.mxu0 0.0
        %618 = vmatprep.subr.mxu0 0.0
        %619 = vmatpush1.msra.mxu0 0.0
        %620 = vmatprep.subr.mxu0 0.0
        %621 = vmatpush1.msra.mxu0 0.0
        %622 = vmatprep.subr.mxu0 0.0
        %623 = vmatpush1.msra.mxu0 0.0
        %624 = vmatprep.subr.mxu0 0.0
        %625 = vmatpush1.msra.mxu0 0.0
        %626 = vmatprep.subr.mxu0 0.0
        %627 = vmatpush1.msra.mxu0 0.0
        %628 = vmatprep.subr.mxu0 0.0
        %629 = vmatpush1.msra.mxu0 0.0
        %630 = vmatprep.subr.mxu0 0.0
        %631 = vmatpush1.msra.mxu0 0.0
        %632 = vmatprep.subr.mxu0 0.0
        %633 = vmatpush1.msra.mxu0 0.0
        %634 = vmatprep.subr.mxu0 0.0
        %635 = vmatpush1.msra.mxu0 0.0
        %636 = vmatprep.mubr.f32.mxu0 0.0
        %637 = vmatmul.mubr.f32.gmra.mrb[0].mxu0 %v570
        %v638 = vpop.f32.mrb[0].mxu0
        %v639 = vadd.f32 0.0, %v638
        %v640 = vpop.f32.mrb[0].mxu0
        %641 = vdwg.mxu0
        %v642 = vsub.f32 %v517, %v639
        %v643 = vmul.f32 %v642, 1.442695
        %v644 = vpow.pop %v643
        %v646 = vsel %vm446, %v644, 0
        %648 = vmatprep.subr.mxu0 0.0
        %649 = vmatpush1.msra.mxu0 %v268
        %650 = vmatprep.subr.mxu0 0.0
        %651 = vmatpush1.msra.mxu0 %v269
        %652 = vmatprep.subr.mxu0 0.0
        %653 = vmatpush1.msra.mxu0 %v270
        %654 = vmatprep.subr.mxu0 0.0
        %655 = vmatpush1.msra.mxu0 %v271
        %656 = vmatprep.subr.mxu0 0.0
        %657 = vmatpush1.msra.mxu0 %v272
        %658 = vmatprep.subr.mxu0 0.0
        %659 = vmatpush1.msra.mxu0 %v273
        %660 = vmatprep.subr.mxu0 0.0
        %661 = vmatpush1.msra.mxu0 %v274
        %662 = vmatprep.subr.mxu0 0.0
        %663 = vmatpush1.msra.mxu0 %v275
        %664 = vmatprep.subr.mxu0 0.0
        %665 = vmatpush1.msra.mxu0 %v276
        %666 = vmatprep.subr.mxu0 0.0
        %667 = vmatpush1.msra.mxu0 %v277
        %668 = vmatprep.subr.mxu0 0.0
        %669 = vmatpush1.msra.mxu0 %v278
        %670 = vmatprep.subr.mxu0 0.0
        %671 = vmatpush1.msra.mxu0 %v279
        %672 = vmatprep.subr.mxu0 0.0
        %673 = vmatpush1.msra.mxu0 %v280
        %674 = vmatprep.subr.mxu0 0.0
        %675 = vmatpush1.msra.mxu0 %v281
        %676 = vmatprep.subr.mxu0 0.0
        %677 = vmatpush1.msra.mxu0 %v282
        %678 = vmatprep.subr.mxu0 0.0
        %679 = vmatpush1.msra.mxu0 0.0
        %680 = vmatprep.subr.mxu0 0.0
        %681 = vmatpush1.msra.mxu0 0.0
        %682 = vmatprep.subr.mxu0 0.0
        %683 = vmatpush1.msra.mxu0 0.0
        %684 = vmatprep.subr.mxu0 0.0
        %685 = vmatpush1.msra.mxu0 0.0
        %686 = vmatprep.subr.mxu0 0.0
        %687 = vmatpush1.msra.mxu0 0.0
        %688 = vmatprep.subr.mxu0 0.0
        %689 = vmatpush1.msra.mxu0 0.0
        %690 = vmatprep.subr.mxu0 0.0
        %691 = vmatpush1.msra.mxu0 0.0
        %692 = vmatprep.subr.mxu0 0.0
        %693 = vmatpush1.msra.mxu0 0.0
        %694 = vmatprep.subr.mxu0 0.0
        %695 = vmatpush1.msra.mxu0 0.0
        %696 = vmatprep.subr.mxu0 0.0
        %697 = vmatpush1.msra.mxu0 0.0
        %698 = vmatprep.subr.mxu0 0.0
        %699 = vmatpush1.msra.mxu0 0.0
        %700 = vmatprep.subr.mxu0 0.0
        %701 = vmatpush1.msra.mxu0 0.0
        %702 = vmatprep.subr.mxu0 0.0
        %703 = vmatpush1.msra.mxu0 0.0
        %704 = vmatprep.subr.mxu0 0.0
        %705 = vmatpush1.msra.mxu0 0.0
        %706 = vmatprep.subr.mxu0 0.0
        %707 = vmatpush1.msra.mxu0 0.0
        %708 = vmatprep.subr.mxu0 0.0
        %709 = vmatpush1.msra.mxu0 0.0
        %710 = vmatprep.subr.mxu0 0.0
        %711 = vmatpush1.msra.mxu0 0.0
        %712 = vmatprep.mubr.f32.mxu0 0.0
        %713 = vmatmul.mubr.f32.gmra.mrb[0].mxu0 %v646
        %v714 = vpop.f32.mrb[0].mxu0
        %v715 = vadd.f32 0.0, %v714
        %v716 = vpop.f32.mrb[0].mxu0
        %717 = vdwg.mxu0
        %v718 = vlog2.pop %v715
        %v719 = vmul.f32 %v718, 0.6931472
        %v720 = vsub.f32 %v642, %v719
        %721 = vst.msk [vmem:[%s156] sm:$0xff] %vm446, %v720
        %p722 = scmp.lt.s32.totalorder %s14, 1
        %s723 = scalar_select %p722, %s14, 1
        %s724 = smul.addr %s723, 8
        %s725 = scalar_lea.vmem %s2, %s724
        // Predicated region
        $region33: #{_lambda_.1} parent=27 // pred_check
          %p726 = pneg %p79
        $region34: #{_lambda_.1} parent=27 // pred_check_branch
          %728 = sbr.rel (%p726) target = $region36
        $region35: #{_lambda_.1} parent=27 // pred_region
          _
        $region36: #{_lambda_.1} parent=27 // pred_fallthru
          _
      $region28: #{_lambda_.1} parent=5 // pred_fallthru
        _
      %p729 = scmp.le.s32.totalorder 2, %s9
      // Predicated region
      $region37: #{_lambda_.1} parent=5 // pred_check
        %p730 = pneg %p729
      $region38: #{_lambda_.1} parent=5 // pred_check_branch
        %732 = sbr.rel (%p730) target = $region40
      $region39: #{_lambda_.1} parent=5 // pred_region
        %s733 = ssub.s32 %s9, 2
        // Predicated region
        $region41: #{_lambda_.1} parent=39 // pred_check
          %p734 = pneg %p85
        $region42: #{_lambda_.1} parent=39 // pred_check_branch
          %736 = sbr.rel (%p734) target = $region44
        $region43: #{_lambda_.1} parent=39 // pred_region
          %p737 = scmp.lt.s32.totalorder %s15, 1
          %s738 = scalar_select %p737, %s15, 1
          %s739 = smul.addr %s738, 8
          %s740 = scalar_lea.vmem %s2, %s739
        $region44: #{_lambda_.1} parent=39 // pred_fallthru
          _
      $region40: #{_lambda_.1} parent=5 // pred_fallthru
        _
    $region6: #{_lambda_.1} parent=1 // loop_footer
      %s13 = sadd.s32 1, %s9
    $region7: #{_lambda_.1} parent=1 // loop_footer_branch
      %8 = sbr.rel target = $region3
    $region8: #{_lambda_.1} parent=1 // loop_exit
      _
    %741 = vsyncpa [#allocation3], 1
    %s742 = scalar_lea.sflag [#allocation3], 1
    %743 = vsyncpa %s742, 1

</llo_original>
